<compile_context>
chip_gen: v5e
topology: v5e:2x2
jax: 0.10.0
libtpu: 0.0.40
codegen_flags: <defaults>
</compile_context>

<pallas_src>
import jax
import jax.numpy as jnp
from jax.experimental import pallas as pl
from jax.experimental.pallas import tpu as pltpu


def _mha_kernel(q_in_ref, kv_in_ref,
                wq_ref, bq_ref, wkv_ref, bkv_ref, wo_ref, bo_ref,
                out_ref):
    """One grid step = `block_n` batch elements: fused projections + attention."""
    f32 = jnp.float32
    mm = wq_ref.dtype                       # dtype fed to the MXU (f32 or bf16)

    nb, lq, e = q_in_ref.shape
    lkv = kv_in_ref.shape[1]

    q_in = q_in_ref[...].reshape(nb * lq, e)        # leading-dim merge: free
    kv_in = kv_in_ref[...].reshape(nb * lkv, e)

    # Composed projections (1/sqrt(E) scale already folded into wq/bq; weights
    # are pre-transposed so there is no in-kernel .T).
    q = jnp.dot(q_in.astype(mm), wq_ref[...],
                preferred_element_type=f32) + bq_ref[...]
    kv = jnp.dot(kv_in.astype(mm), wkv_ref[...],
                 preferred_element_type=f32) + bkv_ref[...]
    k = kv[:, :e]
    v = kv[:, e:]

    qb = q.reshape(nb, lq, e)
    kb = k.reshape(nb, lkv, e)
    vb = v.reshape(nb, lkv, e)

    # Scaled dot-product attention with numerically-stable softmax (f32).
    scores = jnp.einsum("bqe,bke->bqk", qb.astype(mm), kb.astype(mm),
                        preferred_element_type=f32)
    scores = scores - jnp.max(scores, axis=-1, keepdims=True)
    p = jnp.exp(scores)
    denom = jnp.sum(p, axis=-1, keepdims=True)
    p = p * pl.reciprocal(denom, approx=True)       # EUP slot, ~free

    ctx = jnp.einsum("bqk,bke->bqe", p.astype(mm), vb.astype(mm),
                     preferred_element_type=f32)

    # out_proj
    out = jnp.dot(ctx.reshape(nb * lq, e).astype(mm), wo_ref[...],
                  preferred_element_type=f32) + bo_ref[...]
    # TODO(synk): output lane-width is E (=32 here) -> masked vst; a lane-dense
    # (nb, lq*e) out_spec would require an in-kernel relayout, skipped for safety.
    out_ref[...] = out.reshape(nb, lq, e).astype(out_ref.dtype)


def _fuse_params(params, mxu_dtype):
    """Compose the chained linears, fold the 1/sqrt(E) scale into q, pack k|v
    into one (E, 2E) weight, and pre-transpose everything for x @ W layout."""
    f32 = jnp.float32
    p32 = {k: v.astype(f32) for k, v in params.items()}
    e = p32["wq1"].shape[0]
    scale = 1.0 / jnp.sqrt(jnp.asarray(e, f32))

    # torch Linear chain: y = (x @ W1.T + b1) @ W2.T + b2
    #                       = x @ (W2 @ W1).T + (b1 @ W2.T + b2)
    wq_c = (p32["wq2"] @ p32["wq1"]) * scale
    bq_c = (p32["bq1"] @ p32["wq2"].T + p32["bq2"]) * scale
    wk_c = p32["wk2"] @ p32["wk1"]
    bk_c = p32["bk1"] @ p32["wk2"].T + p32["bk2"]
    wv_c = p32["wv2"] @ p32["wv1"]
    bv_c = p32["bv1"] @ p32["wv2"].T + p32["bv2"]

    wq_t = wq_c.T                                       # (E, E)
    wkv_t = jnp.concatenate([wk_c.T, wv_c.T], axis=1)   # (E, 2E)
    wo_t = p32["wo"].T                                  # (E, E)

    return (wq_t.astype(mxu_dtype), bq_c.reshape(1, e),
            wkv_t.astype(mxu_dtype),
            jnp.concatenate([bk_c, bv_c]).reshape(1, 2 * e),
            wo_t.astype(mxu_dtype), p32["bo"].reshape(1, e))


def _pick_block_n(n):
    # Fatter grid steps amortize the ~0.35us/step pipeline overhead, but keep
    # >=2 parallel steps when possible so both v7x TensorCores stay busy.
    if n <= 2:
        return 1
    if n % 2 == 0:
        return n // 2
    return 1


def multi_head_attention(query_input, kv_input, params, *,
                         mxu_dtype=None, block_n=None):
    """query_input: (Lq, N, E), kv_input: (Lkv, N, E) -- PyTorch seq-first.

    Returns attn_output of shape (Lq, N, E) in the input dtype.
    Pass mxu_dtype=jnp.bfloat16 to feed the MXU in bf16 (f32 accumulation,
    f32 element-wise math) on v6e/v7x.
    """
    # TODO(synk): key_padding_mask (the `mask` arg) is not supported; forward
    # is implemented for the mask=None path only.
    lq, n, e = query_input.shape
    lkv = kv_input.shape[0]
    out_dtype = query_input.dtype
    mm_dtype = mxu_dtype if mxu_dtype is not None else jnp.float32

    if block_n is None:
        block_n = _pick_block_n(n)
    assert n % block_n == 0, "batch must be divisible by block_n"
    grid = (n // block_n,)

    # seq-first -> batch-first: one HBM pass paid once in the wrapper (noise at
    # these sizes; avoids a squeezed second-to-last block dim in the kernel).
    q_b = jnp.transpose(query_input, (1, 0, 2)).astype(mm_dtype)
    kv_b = jnp.transpose(kv_input, (1, 0, 2)).astype(mm_dtype)

    wq_t, bq, wkv_t, bkv, wo_t, bo = _fuse_params(params, mm_dtype)

    w_sq = pl.BlockSpec((e, e), lambda i: (0, 0))
    w_wide = pl.BlockSpec((e, 2 * e), lambda i: (0, 0))
    b_sq = pl.BlockSpec((1, e), lambda i: (0, 0))
    b_wide = pl.BlockSpec((1, 2 * e), lambda i: (0, 0))

    out = pl.pallas_call(
        _mha_kernel,
        out_shape=jax.ShapeDtypeStruct((n, lq, e), out_dtype),
        grid=grid,
        in_specs=[
            pl.BlockSpec((block_n, lq, e), lambda i: (i, 0, 0)),
            pl.BlockSpec((block_n, lkv, e), lambda i: (i, 0, 0)),
            w_sq, b_sq,        # composed q projection (scale folded in)
            w_wide, b_wide,    # composed, packed k|v projection
            w_sq, b_sq,        # out_proj
        ],
        out_specs=pl.BlockSpec((block_n, lq, e), lambda i: (i, 0, 0)),
        compiler_params=pltpu.CompilerParams(
            dimension_semantics=("parallel",)),
    )(q_b, kv_b, wq_t, bq, wkv_t, bkv, wo_t, bo)

    return jnp.transpose(out, (1, 0, 2))  # back to (Lq, N, E)


def _reference(query_input, kv_input, params):
    """Pure-JAX reference of the same forward pass (mask=None, num_heads=1)."""
    f32 = jnp.float32
    q_pre = query_input @ params["wq1"].T + params["bq1"]
    k_pre = kv_input @ params["wk1"].T + params["bk1"]
    v_pre = kv_input @ params["wv1"].T + params["bv1"]
    q = q_pre @ params["wq2"].T + params["bq2"]
    k = k_pre @ params["wk2"].T + params["bk2"]
    v = v_pre @ params["wv2"].T + params["bv2"]
    e = q.shape[-1]
    q = q * (1.0 / jnp.sqrt(jnp.asarray(e, f32)))
    qb, kb, vb = (jnp.transpose(t, (1, 0, 2)) for t in (q, k, v))
    scores = jnp.einsum("nqe,nke->nqk", qb, kb)
    p = jax.nn.softmax(scores, axis=-1)
    ctx = jnp.einsum("nqk,nke->nqe", p, vb)
    out = ctx @ params["wo"].T + params["bo"]
    return jnp.transpose(out, (1, 0, 2))


def _init_params(key, hidden):
    """Deterministic synthetic parameters (shapes follow the torch module)."""
    keys = jax.random.split(key, 14)
    s = 1.0 / jnp.sqrt(jnp.asarray(hidden, jnp.float32))
    names = ["wq1", "bq1", "wk1", "bk1", "wv1", "bv1",
             "wq2", "bq2", "wk2", "bk2", "wv2", "bv2", "wo", "bo"]
    params = {}
    for i, name in enumerate(names):
        shape = (hidden, hidden) if name.startswith("w") else (hidden,)
        params[name] = (jax.random.uniform(keys[i], shape, jnp.float32,
                                           minval=-1.0, maxval=1.0) * s)
    return params


if __name__ == "__main__":
    Lq, Lkv, N, E = 8, 8, 2, 32   # seq lengths, batch, hidden_state

    key = jax.random.PRNGKey(0)
    k_q, k_kv, k_p = jax.random.split(key, 3)
    query_input = jax.random.normal(k_q, (Lq, N, E), jnp.float32)
    kv_input = jax.random.normal(k_kv, (Lkv, N, E), jnp.float32)
    params = _init_params(k_p, E)

    out = multi_head_attention(query_input, kv_input, params)
    out = jax.block_until_ready(out)

    ref = jax.block_until_ready(_reference(query_input, kv_input, params))
    assert out.shape == (Lq, N, E)
    assert out.dtype == query_input.dtype
    # Tolerance covers the affine pre-composition and the EUP approx reciprocal
    # in the softmax normalization.
    assert jnp.allclose(out, ref, atol=2e-3, rtol=2e-3)

    print("KERNEL_OK")
</pallas_src>

<mosaic_0001>
module attributes {stable_mosaic.version = 11 : i64} {
  func.func @_mha_kernel(%arg0: i32, %arg1: memref<1x8x32xf32, #tpu.memory_space<vmem>>, %arg2: memref<1x8x32xf32, #tpu.memory_space<vmem>>, %arg3: memref<32x32xf32, #tpu.memory_space<vmem>>, %arg4: memref<1x32xf32, #tpu.memory_space<vmem>>, %arg5: memref<32x64xf32, #tpu.memory_space<vmem>>, %arg6: memref<1x64xf32, #tpu.memory_space<vmem>>, %arg7: memref<32x32xf32, #tpu.memory_space<vmem>>, %arg8: memref<1x32xf32, #tpu.memory_space<vmem>>, %arg9: memref<1x8x32xf32, #tpu.memory_space<vmem>>) attributes {dimension_semantics = [#tpu.dimension_semantics<parallel>], iteration_bounds = array<i64: 2>, scalar_prefetch = 0 : i64, scratch_operands = 0 : i64, tpu.core_type = #tpu.core_type<tc>, window_params = [{transform_indices = @transform_0, window_bounds = array<i64: 1, 8, 32>}, {transform_indices = @transform_1, window_bounds = array<i64: 1, 8, 32>}, {pipeline_mode = #tpu.pipeline_mode<synchronous>, transform_indices = @transform_2, window_bounds = array<i64: 32, 32>}, {pipeline_mode = #tpu.pipeline_mode<synchronous>, transform_indices = @transform_3, window_bounds = array<i64: 1, 32>}, {pipeline_mode = #tpu.pipeline_mode<synchronous>, transform_indices = @transform_4, window_bounds = array<i64: 32, 64>}, {pipeline_mode = #tpu.pipeline_mode<synchronous>, transform_indices = @transform_5, window_bounds = array<i64: 1, 64>}, {pipeline_mode = #tpu.pipeline_mode<synchronous>, transform_indices = @transform_6, window_bounds = array<i64: 32, 32>}, {pipeline_mode = #tpu.pipeline_mode<synchronous>, transform_indices = @transform_7, window_bounds = array<i64: 1, 32>}, {transform_indices = @transform_8, window_bounds = array<i64: 1, 8, 32>}]} {
    %c0 = arith.constant 0 : index
    %c0_0 = arith.constant 0 : index
    %c0_1 = arith.constant 0 : index
    %0 = vector.load %arg1[%c0, %c0_0, %c0_1] : memref<1x8x32xf32, #tpu.memory_space<vmem>>, vector<1x8x32xf32>
    %1 = vector.shape_cast %0 : vector<1x8x32xf32> to vector<8x32xf32>
    %c0_2 = arith.constant 0 : index
    %c0_3 = arith.constant 0 : index
    %c0_4 = arith.constant 0 : index
    %2 = vector.load %arg2[%c0_2, %c0_3, %c0_4] : memref<1x8x32xf32, #tpu.memory_space<vmem>>, vector<1x8x32xf32>
    %3 = vector.shape_cast %2 : vector<1x8x32xf32> to vector<8x32xf32>
    %c0_5 = arith.constant 0 : index
    %c0_6 = arith.constant 0 : index
    %4 = vector.load %arg3[%c0_5, %c0_6] : memref<32x32xf32, #tpu.memory_space<vmem>>, vector<32x32xf32>
    %cst = arith.constant dense<0.000000e+00> : vector<8x32xf32>
    %5 = tpu.matmul %1, %4, %cst {dimension_numbers = #tpu.dot_dimension_numbers<[1], [0], [0], [1], [0, 0, 1, 1], [], []>} : vector<8x32xf32>, vector<32x32xf32>, vector<8x32xf32> -> vector<8x32xf32>
    %c0_7 = arith.constant 0 : index
    %c0_8 = arith.constant 0 : index
    %6 = vector.load %arg4[%c0_7, %c0_8] : memref<1x32xf32, #tpu.memory_space<vmem>>, vector<1x32xf32>
    %7 = vector.broadcast %6 : vector<1x32xf32> to vector<8x32xf32>
    %8 = arith.addf %5, %7 : vector<8x32xf32>
    %c0_9 = arith.constant 0 : index
    %c0_10 = arith.constant 0 : index
    %9 = vector.load %arg5[%c0_9, %c0_10] : memref<32x64xf32, #tpu.memory_space<vmem>>, vector<32x64xf32>
    %cst_11 = arith.constant dense<0.000000e+00> : vector<8x64xf32>
    %10 = tpu.matmul %3, %9, %cst_11 {dimension_numbers = #tpu.dot_dimension_numbers<[1], [0], [0], [1], [0, 0, 1, 1], [], []>} : vector<8x32xf32>, vector<32x64xf32>, vector<8x64xf32> -> vector<8x64xf32>
    %c0_12 = arith.constant 0 : index
    %c0_13 = arith.constant 0 : index
    %11 = vector.load %arg6[%c0_12, %c0_13] : memref<1x64xf32, #tpu.memory_space<vmem>>, vector<1x64xf32>
    %12 = vector.broadcast %11 : vector<1x64xf32> to vector<8x64xf32>
    %13 = arith.addf %10, %12 : vector<8x64xf32>
    %14 = vector.extract_strided_slice %13 {offsets = [0, 0], sizes = [8, 32], strides = [1, 1]} : vector<8x64xf32> to vector<8x32xf32>
    %15 = vector.extract_strided_slice %13 {offsets = [0, 32], sizes = [8, 32], strides = [1, 1]} : vector<8x64xf32> to vector<8x32xf32>
    %16 = vector.shape_cast %8 : vector<8x32xf32> to vector<1x8x32xf32>
    %17 = vector.shape_cast %14 : vector<8x32xf32> to vector<1x8x32xf32>
    %18 = vector.shape_cast %15 : vector<8x32xf32> to vector<1x8x32xf32>
    "tpu.trace_start"() <{level = 10 : i32, message = "bqe,bke->bqk"}> : () -> ()
    %cst_14 = arith.constant dense<0.000000e+00> : vector<1x8x8xf32>
    %19 = tpu.matmul %16, %17, %cst_14 {dimension_numbers = #tpu.dot_dimension_numbers<[2], [2], [1], [1], [0, 0, 0, 1, 1, 1], [0], [0]>} : vector<1x8x32xf32>, vector<1x8x32xf32>, vector<1x8x8xf32> -> vector<1x8x8xf32>
    "tpu.trace_stop"() : () -> ()
    %cst_15 = arith.constant dense<0xFF800000> : vector<1x8xf32>
    %20 = vector.multi_reduction <maximumf>, %19, %cst_15 [2] : vector<1x8x8xf32> to vector<1x8xf32>
    %21 = vector.shape_cast %20 : vector<1x8xf32> to vector<1x8x1xf32>
    %22 = vector.broadcast %21 : vector<1x8x1xf32> to vector<1x8x8xf32>
    %23 = arith.subf %19, %22 : vector<1x8x8xf32>
    %24 = math.exp %23 : vector<1x8x8xf32>
    %cst_16 = arith.constant dense<0.000000e+00> : vector<1x8xf32>
    %25 = vector.multi_reduction <add>, %24, %cst_16 [2] : vector<1x8x8xf32> to vector<1x8xf32>
    %26 = vector.shape_cast %25 : vector<1x8xf32> to vector<1x8x1xf32>
    %27 = tpu.reciprocal %26 {approx = true} : vector<1x8x1xf32> -> vector<1x8x1xf32>
    %28 = vector.broadcast %27 : vector<1x8x1xf32> to vector<1x8x8xf32>
    %29 = arith.mulf %24, %28 : vector<1x8x8xf32>
    "tpu.trace_start"() <{level = 10 : i32, message = "bqk,bke->bqe"}> : () -> ()
    %cst_17 = arith.constant dense<0.000000e+00> : vector<1x8x32xf32>
    %30 = tpu.matmul %29, %18, %cst_17 {dimension_numbers = #tpu.dot_dimension_numbers<[2], [1], [1], [2], [0, 0, 0, 1, 1, 2], [0], [0]>} : vector<1x8x8xf32>, vector<1x8x32xf32>, vector<1x8x32xf32> -> vector<1x8x32xf32>
    "tpu.trace_stop"() : () -> ()
    %31 = vector.shape_cast %30 : vector<1x8x32xf32> to vector<8x32xf32>
    %c0_18 = arith.constant 0 : index
    %c0_19 = arith.constant 0 : index
    %32 = vector.load %arg7[%c0_18, %c0_19] : memref<32x32xf32, #tpu.memory_space<vmem>>, vector<32x32xf32>
    %cst_20 = arith.constant dense<0.000000e+00> : vector<8x32xf32>
    %33 = tpu.matmul %31, %32, %cst_20 {dimension_numbers = #tpu.dot_dimension_numbers<[1], [0], [0], [1], [0, 0, 1, 1], [], []>} : vector<8x32xf32>, vector<32x32xf32>, vector<8x32xf32> -> vector<8x32xf32>
    %c0_21 = arith.constant 0 : index
    %c0_22 = arith.constant 0 : index
    %34 = vector.load %arg8[%c0_21, %c0_22] : memref<1x32xf32, #tpu.memory_space<vmem>>, vector<1x32xf32>
    %35 = vector.broadcast %34 : vector<1x32xf32> to vector<8x32xf32>
    %36 = arith.addf %33, %35 : vector<8x32xf32>
    %37 = vector.shape_cast %36 : vector<8x32xf32> to vector<1x8x32xf32>
    %c0_23 = arith.constant 0 : index
    %c0_24 = arith.constant 0 : index
    %c0_25 = arith.constant 0 : index
    %38 = vector.load %arg9[%c0_23, %c0_24, %c0_25] : memref<1x8x32xf32, #tpu.memory_space<vmem>>, vector<1x8x32xf32>
    tpu.vector_store %arg9[%c0_23, %c0_24, %c0_25], %37 {strides = array<i32>} : memref<1x8x32xf32, #tpu.memory_space<vmem>>, vector<1x8x32xf32>,
    return
  }
  func.func @transform_0(%arg0: i32) -> (i32, i32, i32) {
    %c0_i32 = arith.constant 0 : i32
    %c0_i32_0 = arith.constant 0 : i32
    %c0_i32_1 = arith.constant 0 : i32
    return %arg0, %c0_i32, %c0_i32_0 : i32, i32, i32
  }
  func.func @transform_1(%arg0: i32) -> (i32, i32, i32) {
    %c0_i32 = arith.constant 0 : i32
    %c0_i32_0 = arith.constant 0 : i32
    %c0_i32_1 = arith.constant 0 : i32
    return %arg0, %c0_i32, %c0_i32_0 : i32, i32, i32
  }
  func.func @transform_2(%arg0: i32) -> (i32, i32) {
    %c0_i32 = arith.constant 0 : i32
    %c0_i32_0 = arith.constant 0 : i32
    %c0_i32_1 = arith.constant 0 : i32
    return %c0_i32, %c0_i32_0 : i32, i32
  }
  func.func @transform_3(%arg0: i32) -> (i32, i32) {
    %c0_i32 = arith.constant 0 : i32
    %c0_i32_0 = arith.constant 0 : i32
    %c0_i32_1 = arith.constant 0 : i32
    return %c0_i32, %c0_i32_0 : i32, i32
  }
  func.func @transform_4(%arg0: i32) -> (i32, i32) {
    %c0_i32 = arith.constant 0 : i32
    %c0_i32_0 = arith.constant 0 : i32
    %c0_i32_1 = arith.constant 0 : i32
    return %c0_i32, %c0_i32_0 : i32, i32
  }
  func.func @transform_5(%arg0: i32) -> (i32, i32) {
    %c0_i32 = arith.constant 0 : i32
    %c0_i32_0 = arith.constant 0 : i32
    %c0_i32_1 = arith.constant 0 : i32
    return %c0_i32, %c0_i32_0 : i32, i32
  }
  func.func @transform_6(%arg0: i32) -> (i32, i32) {
    %c0_i32 = arith.constant 0 : i32
    %c0_i32_0 = arith.constant 0 : i32
    %c0_i32_1 = arith.constant 0 : i32
    return %c0_i32, %c0_i32_0 : i32, i32
  }
  func.func @transform_7(%arg0: i32) -> (i32, i32) {
    %c0_i32 = arith.constant 0 : i32
    %c0_i32_0 = arith.constant 0 : i32
    %c0_i32_1 = arith.constant 0 : i32
    return %c0_i32, %c0_i32_0 : i32, i32
  }
  func.func @transform_8(%arg0: i32) -> (i32, i32, i32) {
    %c0_i32 = arith.constant 0 : i32
    %c0_i32_0 = arith.constant 0 : i32
    %c0_i32_1 = arith.constant 0 : i32
    return %arg0, %c0_i32, %c0_i32_0 : i32, i32, i32
  }
}

</mosaic_0001>

<llo_original>
// kernel: tpu_custom_call.1
$region0: #{tpu_custom_call.1}
  #allocation0 [shape = 'u32[]', space=smem, size = 0x4, offset = 0x4, fixed_abs, tag = 'smem constant byte address 0x4 - core index']
  #allocation1 [shape = 'u32[72,128]{1,0:T(1,128)}', space=vmem, size = 0x9000, scoped, tag = 'internal scratch']
  %s0 = inlined_call_operand.hbm [shape: f32[2,8,32], index: 0, kind: input, shape index: {}]
  %s1 = inlined_call_operand.hbm [shape: f32[2,8,32], index: 1, kind: input, shape index: {}]
  %s2 = inlined_call_operand.hbm [shape: f32[32,32], index: 2, kind: input, shape index: {}]
  %s3 = inlined_call_operand.vmem [shape: f32[1,32], index: 3, kind: input, shape index: {}]
  %s4 = inlined_call_operand.hbm [shape: f32[32,64], index: 4, kind: input, shape index: {}]
  %s5 = inlined_call_operand.vmem [shape: f32[1,64], index: 5, kind: input, shape index: {}]
  %s6 = inlined_call_operand.hbm [shape: f32[32,32], index: 6, kind: input, shape index: {}]
  %s7 = inlined_call_operand.vmem [shape: f32[1,32], index: 7, kind: input, shape index: {}]
  %s8 = inlined_call_operand.hbm [shape: f32[2,8,32], index: 8, kind: output, shape index: {}]
  %s9 = sld [smem:[#allocation0]]
  $region85: #{tpu_custom_call.1} parent=0
    _
  %s11 = ssub.s32 1, %s9
  %s12 = scalar_select 0, %s11, %s9
  $region1: #{tpu_custom_call.1} parent=0
    #allocation2 [shape = 'u8[8192]{0}', space=vmem, size = 0x2000, scoped, tag = 'input window, operand 0']
    #allocation3 [shape = 's32[2]{0}', space=sflag, size = 0x8, scoped, tag = 'scoped memory for tpu_custom_call.1']
    #allocation4 [shape = 's32[2]{0}', space=sflag, size = 0x8, scoped, tag = 'scoped memory for tpu_custom_call.1']
    #allocation5 [shape = 'u8[8192]{0}', space=vmem, size = 0x2000, scoped, tag = 'input window, operand 1']
    #allocation6 [shape = 's32[2]{0}', space=sflag, size = 0x8, scoped, tag = 'scoped memory for tpu_custom_call.1']
    #allocation7 [shape = 'u8[16384]{0}', space=vmem, size = 0x4000, scoped, tag = 'input window, operand 2, single buffered']
    #allocation8 [shape = 'u8[16384]{0}', space=vmem, size = 0x4000, scoped, tag = 'input window, operand 4, single buffered']
    #allocation9 [shape = 's32[1]{0}', space=sflag, size = 0x4, scoped, tag = 'scoped memory for tpu_custom_call.1']
    #allocation10 [shape = 'u8[16384]{0}', space=vmem, size = 0x4000, scoped, tag = 'input window, operand 6, single buffered']
    #allocation11 [shape = 'u8[8192]{0}', space=vmem, size = 0x2000, scoped, tag = 'output window, operand 0']
    %13 = vsyncpa [#allocation3], 0
    %s14 = scalar_lea.sflag [#allocation3], 1
    %15 = vsyncpa %s14, 0
    %16 = vsyncpa [#allocation6], 0
    %s17 = scalar_lea.sflag [#allocation6], 1
    %18 = vsyncpa %s17, 0
    %19 = vsyncpa [#allocation9], 0
    %20 = vsyncpa [#allocation4], 0
    %s21 = scalar_lea.sflag [#allocation4], 1
    %22 = vsyncpa %s21, 0
    loop: start=0, step=1, limit=4
    $region2: #{tpu_custom_call.1} parent=1 // loop_pre_header
      _
    $region3: #{tpu_custom_call.1} parent=1 // loop_header
      %s24 = sphi 0, %s28
      %p25 = scmp.ge.s32.totalorder %s24, 4
      %s34 = sphi 0, %s36
      %s37 = sphi 0, %s34
      %s38 = sphi 0, %s37
      %s54 = sphi 0, %s38
      %s60 = sphi 0, %s62
      %s63 = sphi 0, %s60
      %s64 = sphi 0, %s63
      %s80 = sphi 0, %s64
      %s84 = sphi 0, %s84
      %s86 = sphi 0, %s84
      %s87 = sphi 0, %s86
      %s101 = sphi 0, %s87
      %s105 = sphi 0, %s105
      %s107 = sphi 0, %s105
      %s108 = sphi 0, %s107
      %s122 = sphi 0, %s108
      %s126 = sphi 0, %s126
      %s128 = sphi 0, %s126
      %s129 = sphi 0, %s128
      %s143 = sphi 0, %s129
      %s147 = sphi 0, %s147
      %s149 = sphi 0, %s147
      %s150 = sphi 0, %s149
      %s164 = sphi 0, %s150
      %s168 = sphi 0, %s168
      %s170 = sphi 0, %s168
      %s171 = sphi 0, %s170
      %s185 = sphi 0, %s171
      %s189 = sphi 0, %s189
      %s191 = sphi 0, %s189
      %s192 = sphi 0, %s191
      %s206 = sphi 0, %s192
      %s212 = sphi 0, %s214
      %s215 = sphi 0, %s212
      %s216 = sphi 0, %s215
      %s232 = sphi 0, %s216
    $region4: #{tpu_custom_call.1} parent=1 // loop_header_branch
      %27 = sbr.rel (%p25) target = $region8
    $region5: #{tpu_custom_call.1} parent=1 // loop_body
      %s29 = ssub.s32 %s24, 1
      %s30 = ssub.s32 %s24, 2
      %s31 = sadd.s32 %s24, 1
      %s32 = ssub.s32 %s24, %s31
      %p33 = scmp.eq.s32.totalorder %s32, 0
      %s35 = sadd.s32 %s34, 1
      %s36 = scalar_select %p33, %s34, %s35
      %p39 = pneg %p33
      %p40 = scmp.eq.s32.totalorder %s24, 1
      %p41 = por %p39, %p40
      %p42 = scmp.ne.s32.totalorder %s34, %s37
      %p43 = scmp.eq.s32.totalorder %s24, 0
      %p44 = por %p42, %p43
      %p45 = scmp.ne.s32.totalorder %s34, %s37
      %p46 = scmp.eq.s32.totalorder %s29, 1
      %p47 = por %p45, %p46
      %p48 = scmp.ne.s32.totalorder %s37, %s38
      %p49 = scmp.eq.s32.totalorder %s29, 0
      %p50 = por %p48, %p49
      %p51 = scmp.ne.s32.totalorder %s37, %s38
      %p52 = scmp.eq.s32.totalorder %s30, 1
      %p53 = por %p51, %p52
      %p55 = scmp.ne.s32.totalorder %s38, %s54
      %p56 = scmp.eq.s32.totalorder %s30, 0
      %p57 = por %p55, %p56
      %s58 = ssub.s32 %s24, %s31
      %p59 = scmp.eq.s32.totalorder %s58, 0
      %s61 = sadd.s32 %s60, 1
      %s62 = scalar_select %p59, %s60, %s61
      %p65 = pneg %p59
      %p66 = scmp.eq.s32.totalorder %s24, 1
      %p67 = por %p65, %p66
      %p68 = scmp.ne.s32.totalorder %s60, %s63
      %p69 = scmp.eq.s32.totalorder %s24, 0
      %p70 = por %p68, %p69
      %p71 = scmp.ne.s32.totalorder %s60, %s63
      %p72 = scmp.eq.s32.totalorder %s29, 1
      %p73 = por %p71, %p72
      %p74 = scmp.ne.s32.totalorder %s63, %s64
      %p75 = scmp.eq.s32.totalorder %s29, 0
      %p76 = por %p74, %p75
      %p77 = scmp.ne.s32.totalorder %s63, %s64
      %p78 = scmp.eq.s32.totalorder %s30, 1
      %p79 = por %p77, %p78
      %p81 = scmp.ne.s32.totalorder %s64, %s80
      %p82 = scmp.eq.s32.totalorder %s30, 0
      %p83 = por %p81, %p82
      %s85 = sadd.s32 %s84, 1
      %p88 = scmp.eq.s32.totalorder %s24, 1
      %p89 = scmp.ne.s32.totalorder %s84, %s86
      %p90 = scmp.eq.s32.totalorder %s24, 0
      %p91 = por %p89, %p90
      %p92 = scmp.ne.s32.totalorder %s84, %s86
      %p93 = scmp.eq.s32.totalorder %s29, 1
      %p94 = por %p92, %p93
      %p95 = scmp.ne.s32.totalorder %s86, %s87
      %p96 = scmp.eq.s32.totalorder %s29, 0
      %p97 = por %p95, %p96
      %p98 = scmp.ne.s32.totalorder %s86, %s87
      %p99 = scmp.eq.s32.totalorder %s30, 1
      %p100 = por %p98, %p99
      %p102 = scmp.ne.s32.totalorder %s87, %s101
      %p103 = scmp.eq.s32.totalorder %s30, 0
      %p104 = por %p102, %p103
      %s106 = sadd.s32 %s105, 1
      %p109 = scmp.eq.s32.totalorder %s24, 1
      %p110 = scmp.ne.s32.totalorder %s105, %s107
      %p111 = scmp.eq.s32.totalorder %s24, 0
      %p112 = por %p110, %p111
      %p113 = scmp.ne.s32.totalorder %s105, %s107
      %p114 = scmp.eq.s32.totalorder %s29, 1
      %p115 = por %p113, %p114
      %p116 = scmp.ne.s32.totalorder %s107, %s108
      %p117 = scmp.eq.s32.totalorder %s29, 0
      %p118 = por %p116, %p117
      %p119 = scmp.ne.s32.totalorder %s107, %s108
      %p120 = scmp.eq.s32.totalorder %s30, 1
      %p121 = por %p119, %p120
      %p123 = scmp.ne.s32.totalorder %s108, %s122
      %p124 = scmp.eq.s32.totalorder %s30, 0
      %p125 = por %p123, %p124
      %s127 = sadd.s32 %s126, 1
      %p130 = scmp.eq.s32.totalorder %s24, 1
      %p131 = scmp.ne.s32.totalorder %s126, %s128
      %p132 = scmp.eq.s32.totalorder %s24, 0
      %p133 = por %p131, %p132
      %p134 = scmp.ne.s32.totalorder %s126, %s128
      %p135 = scmp.eq.s32.totalorder %s29, 1
      %p136 = por %p134, %p135
      %p137 = scmp.ne.s32.totalorder %s128, %s129
      %p138 = scmp.eq.s32.totalorder %s29, 0
      %p139 = por %p137, %p138
      %p140 = scmp.ne.s32.totalorder %s128, %s129
      %p141 = scmp.eq.s32.totalorder %s30, 1
      %p142 = por %p140, %p141
      %p144 = scmp.ne.s32.totalorder %s129, %s143
      %p145 = scmp.eq.s32.totalorder %s30, 0
      %p146 = por %p144, %p145
      %s148 = sadd.s32 %s147, 1
      %p151 = scmp.eq.s32.totalorder %s24, 1
      %p152 = scmp.ne.s32.totalorder %s147, %s149
      %p153 = scmp.eq.s32.totalorder %s24, 0
      %p154 = por %p152, %p153
      %p155 = scmp.ne.s32.totalorder %s147, %s149
      %p156 = scmp.eq.s32.totalorder %s29, 1
      %p157 = por %p155, %p156
      %p158 = scmp.ne.s32.totalorder %s149, %s150
      %p159 = scmp.eq.s32.totalorder %s29, 0
      %p160 = por %p158, %p159
      %p161 = scmp.ne.s32.totalorder %s149, %s150
      %p162 = scmp.eq.s32.totalorder %s30, 1
      %p163 = por %p161, %p162
      %p165 = scmp.ne.s32.totalorder %s150, %s164
      %p166 = scmp.eq.s32.totalorder %s30, 0
      %p167 = por %p165, %p166
      %s169 = sadd.s32 %s168, 1
      %p172 = scmp.eq.s32.totalorder %s24, 1
      %p173 = scmp.ne.s32.totalorder %s168, %s170
      %p174 = scmp.eq.s32.totalorder %s24, 0
      %p175 = por %p173, %p174
      %p176 = scmp.ne.s32.totalorder %s168, %s170
      %p177 = scmp.eq.s32.totalorder %s29, 1
      %p178 = por %p176, %p177
      %p179 = scmp.ne.s32.totalorder %s170, %s171
      %p180 = scmp.eq.s32.totalorder %s29, 0
      %p181 = por %p179, %p180
      %p182 = scmp.ne.s32.totalorder %s170, %s171
      %p183 = scmp.eq.s32.totalorder %s30, 1
      %p184 = por %p182, %p183
      %p186 = scmp.ne.s32.totalorder %s171, %s185
      %p187 = scmp.eq.s32.totalorder %s30, 0
      %p188 = por %p186, %p187
      %s190 = sadd.s32 %s189, 1
      %p193 = scmp.eq.s32.totalorder %s24, 1
      %p194 = scmp.ne.s32.totalorder %s189, %s191
      %p195 = scmp.eq.s32.totalorder %s24, 0
      %p196 = por %p194, %p195
      %p197 = scmp.ne.s32.totalorder %s189, %s191
      %p198 = scmp.eq.s32.totalorder %s29, 1
      %p199 = por %p197, %p198
      %p200 = scmp.ne.s32.totalorder %s191, %s192
      %p201 = scmp.eq.s32.totalorder %s29, 0
      %p202 = por %p200, %p201
      %p203 = scmp.ne.s32.totalorder %s191, %s192
      %p204 = scmp.eq.s32.totalorder %s30, 1
      %p205 = por %p203, %p204
      %p207 = scmp.ne.s32.totalorder %s192, %s206
      %p208 = scmp.eq.s32.totalorder %s30, 0
      %p209 = por %p207, %p208
      %s210 = ssub.s32 %s24, %s31
      %p211 = scmp.eq.s32.totalorder %s210, 0
      %s213 = sadd.s32 %s212, 1
      %s214 = scalar_select %p211, %s212, %s213
      %p217 = pneg %p211
      %p218 = scmp.eq.s32.totalorder %s24, 1
      %p219 = por %p217, %p218
      %p220 = scmp.ne.s32.totalorder %s212, %s215
      %p221 = scmp.eq.s32.totalorder %s24, 0
      %p222 = por %p220, %p221
      %p223 = scmp.ne.s32.totalorder %s212, %s215
      %p224 = scmp.eq.s32.totalorder %s29, 1
      %p225 = por %p223, %p224
      %p226 = scmp.ne.s32.totalorder %s215, %s216
      %p227 = scmp.eq.s32.totalorder %s29, 0
      %p228 = por %p226, %p227
      %p229 = scmp.ne.s32.totalorder %s215, %s216
      %p230 = scmp.eq.s32.totalorder %s30, 1
      %p231 = por %p229, %p230
      %p233 = scmp.ne.s32.totalorder %s216, %s232
      %p234 = scmp.eq.s32.totalorder %s30, 0
      %p235 = por %p233, %p234
      %p236 = scmp.le.s32.totalorder 1, %s24
      %p237 = scmp.lt.s32.totalorder %s24, 3
      %p238 = pnand %p236, %p237
      %p239 = pneg %p238
      // Predicated region
      $region9: #{tpu_custom_call.1} parent=5 // pred_check
        _
      $region10: #{tpu_custom_call.1} parent=5 // pred_check_branch
        %241 = sbr.rel (%p238) target = $region12
      $region11: #{tpu_custom_call.1} parent=5 // pred_region
        %s242 = ssub.s32 %s24, 1
        // Predicated region
        $region13: #{tpu_custom_call.1} parent=11 // pred_check
          %p243 = pneg %p97
        $region14: #{tpu_custom_call.1} parent=11 // pred_check_branch
          %245 = sbr.rel (%p243) target = $region16
        $region15: #{tpu_custom_call.1} parent=11 // pred_region
          %247 = vsyncadd [#allocation6], 0
          %s248 = sshll.u32 %s2, 4
          %s249 = int_to_ptr.hbm [resolvable:$true] %s248
          %s250 = sshll.u32 [#allocation7], 4
          %s251 = int_to_ptr.vmem [resolvable:$true] %s250
          %256 = dma.hbm_to_vmem [thread:$0]  %s249, 512, %s251, [#allocation6], 128, 128, 8
        $region16: #{tpu_custom_call.1} parent=11 // pred_fallthru
          _
        // Predicated region
        $region17: #{tpu_custom_call.1} parent=11 // pred_check
          %p257 = pneg %p118
        $region18: #{tpu_custom_call.1} parent=11 // pred_check_branch
          %259 = sbr.rel (%p257) target = $region20
        $region19: #{tpu_custom_call.1} parent=11 // pred_region
          _
        $region20: #{tpu_custom_call.1} parent=11 // pred_fallthru
          _
        // Predicated region
        $region21: #{tpu_custom_call.1} parent=11 // pred_check
          %p260 = pneg %p139
        $region22: #{tpu_custom_call.1} parent=11 // pred_check_branch
          %262 = sbr.rel (%p260) target = $region24
        $region23: #{tpu_custom_call.1} parent=11 // pred_region
          %264 = vsyncadd [#allocation9], 0
          %s265 = sshll.u32 %s4, 4
          %s266 = int_to_ptr.hbm [resolvable:$true] %s265
          %s267 = sshll.u32 [#allocation8], 4
          %s268 = int_to_ptr.vmem [resolvable:$true] %s267
          %273 = dma.hbm_to_vmem [thread:$0]  %s266, 512, %s268, [#allocation9], 128, 128, 8
        $region24: #{tpu_custom_call.1} parent=11 // pred_fallthru
          _
        // Predicated region
        $region25: #{tpu_custom_call.1} parent=11 // pred_check
          %p274 = pneg %p160
        $region26: #{tpu_custom_call.1} parent=11 // pred_check_branch
          %276 = sbr.rel (%p274) target = $region28
        $region27: #{tpu_custom_call.1} parent=11 // pred_region
          _
        $region28: #{tpu_custom_call.1} parent=11 // pred_fallthru
          _
        // Predicated region
        $region29: #{tpu_custom_call.1} parent=11 // pred_check
          %p277 = pneg %p181
        $region30: #{tpu_custom_call.1} parent=11 // pred_check_branch
          %279 = sbr.rel (%p277) target = $region32
        $region31: #{tpu_custom_call.1} parent=11 // pred_region
          %281 = vsyncadd [#allocation9], 0
          %s282 = sshll.u32 %s6, 4
          %s283 = int_to_ptr.hbm [resolvable:$true] %s282
          %s284 = sshll.u32 [#allocation10], 4
          %s285 = int_to_ptr.vmem [resolvable:$true] %s284
          %290 = dma.hbm_to_vmem [thread:$0]  %s283, 512, %s285, [#allocation9], 128, 128, 8
        $region32: #{tpu_custom_call.1} parent=11 // pred_fallthru
          _
        // Predicated region
        $region33: #{tpu_custom_call.1} parent=11 // pred_check
          %p291 = pneg %p202
        $region34: #{tpu_custom_call.1} parent=11 // pred_check_branch
          %293 = sbr.rel (%p291) target = $region36
        $region35: #{tpu_custom_call.1} parent=11 // pred_region
          _
        $region36: #{tpu_custom_call.1} parent=11 // pred_fallthru
          _
      $region12: #{tpu_custom_call.1} parent=5 // pred_fallthru
        _
      %p294 = scmp.lt.s32.totalorder %s24, 2
      // Predicated region
      $region37: #{tpu_custom_call.1} parent=5 // pred_check
        %p295 = pneg %p294
      $region38: #{tpu_custom_call.1} parent=5 // pred_check_branch
        %297 = sbr.rel (%p295) target = $region40
      $region39: #{tpu_custom_call.1} parent=5 // pred_region
        // Predicated region
        $region41: #{tpu_custom_call.1} parent=39 // pred_check
          %p298 = pneg %p44
        $region42: #{tpu_custom_call.1} parent=39 // pred_check_branch
          %300 = sbr.rel (%p298) target = $region44
        $region43: #{tpu_custom_call.1} parent=39 // pred_region
          %s301 = sand.u32 %s34, 1
          %s302 = scalar_lea.sflag [#allocation3], %s301
          %s303 = sand.u32 %s34, 1
          %s304 = smul.addr %s303, 8
          %s305 = scalar_lea.vmem [#allocation2], %s304
          %307 = vsyncadd %s302, 0
          %s308 = smul.addr %s24, 8
          %s309 = scalar_lea.hbm %s0, %s308
          %s311 = sshll.u32 %s309, 4
          %s312 = int_to_ptr.hbm [resolvable:$true] %s311
          %s313 = sshll.u32 %s305, 4
          %s314 = int_to_ptr.vmem [resolvable:$true] %s313
          %316 = dma.hbm_to_vmem [thread:$0]  %s312, 128, %s314, %s302
        $region44: #{tpu_custom_call.1} parent=39 // pred_fallthru
          _
        // Predicated region
        $region45: #{tpu_custom_call.1} parent=39 // pred_check
          %p317 = pneg %p70
        $region46: #{tpu_custom_call.1} parent=39 // pred_check_branch
          %319 = sbr.rel (%p317) target = $region48
        $region47: #{tpu_custom_call.1} parent=39 // pred_region
          %s320 = sand.u32 %s24, 1
          %s321 = scalar_lea.sflag [#allocation6], %s320
          %s322 = sand.u32 %s60, 1
          %s323 = smul.addr %s322, 8
          %s324 = scalar_lea.vmem [#allocation5], %s323
          %326 = vsyncadd %s321, 0
          %s327 = smul.addr %s24, 8
          %s328 = scalar_lea.hbm %s1, %s327
          %s330 = sshll.u32 %s328, 4
          %s331 = int_to_ptr.hbm [resolvable:$true] %s330
          %s332 = sshll.u32 %s324, 4
          %s333 = int_to_ptr.vmem [resolvable:$true] %s332
          %335 = dma.hbm_to_vmem [thread:$0]  %s331, 128, %s333, %s321
        $region48: #{tpu_custom_call.1} parent=39 // pred_fallthru
          _
      $region40: #{tpu_custom_call.1} parent=5 // pred_fallthru
        _
      %p336 = scmp.le.s32.totalorder 1, %s24
      %p337 = scmp.lt.s32.totalorder %s24, 3
      %p338 = pnand %p336, %p337
      %p339 = pneg %p338
      // Predicated region
      $region49: #{tpu_custom_call.1} parent=5 // pred_check
        _
      $region50: #{tpu_custom_call.1} parent=5 // pred_check_branch
        %341 = sbr.rel (%p338) target = $region52
      $region51: #{tpu_custom_call.1} parent=5 // pred_region
        %s342 = ssub.s32 %s24, 1
        %s343 = sand.u32 %s37, 1
        %s344 = scalar_lea.sflag [#allocation3], %s343
        %s345 = sand.u32 %s37, 1
        %s346 = smul.addr %s345, 8
        %s347 = scalar_lea.vmem [#allocation2], %s346
        // Predicated region
        $region53: #{tpu_custom_call.1} parent=51 // pred_check
          %p348 = pneg %p50
        $region54: #{tpu_custom_call.1} parent=51 // pred_check_branch
          %350 = sbr.rel (%p348) target = $region56
        $region55: #{tpu_custom_call.1} parent=51 // pred_region
          %352 = dma.done %s344, 128
        $region56: #{tpu_custom_call.1} parent=51 // pred_fallthru
          _
        %s353 = sand.u32 %s29, 1
        %s354 = scalar_lea.sflag [#allocation6], %s353
        %s355 = sand.u32 %s63, 1
        %s356 = smul.addr %s355, 8
        %s357 = scalar_lea.vmem [#allocation5], %s356
        // Predicated region
        $region57: #{tpu_custom_call.1} parent=51 // pred_check
          %p358 = pneg %p76
        $region58: #{tpu_custom_call.1} parent=51 // pred_check_branch
          %360 = sbr.rel (%p358) target = $region60
        $region59: #{tpu_custom_call.1} parent=51 // pred_region
          %362 = dma.done %s354, 128
        $region60: #{tpu_custom_call.1} parent=51 // pred_fallthru
          _
        // Predicated region
        $region61: #{tpu_custom_call.1} parent=51 // pred_check
          %p363 = pneg %p97
        $region62: #{tpu_custom_call.1} parent=51 // pred_check_branch
          %365 = sbr.rel (%p363) target = $region64
        $region63: #{tpu_custom_call.1} parent=51 // pred_region
          %367 = dma.done [#allocation6], 512
        $region64: #{tpu_custom_call.1} parent=51 // pred_fallthru
          _
        // Predicated region
        $region65: #{tpu_custom_call.1} parent=51 // pred_check
          %p368 = pneg %p139
        $region66: #{tpu_custom_call.1} parent=51 // pred_check_branch
          %370 = sbr.rel (%p368) target = $region68
        $region67: #{tpu_custom_call.1} parent=51 // pred_region
          %372 = dma.done [#allocation9], 512
        $region68: #{tpu_custom_call.1} parent=51 // pred_fallthru
          _
        // Predicated region
        $region69: #{tpu_custom_call.1} parent=51 // pred_check
          %p373 = pneg %p181
        $region70: #{tpu_custom_call.1} parent=51 // pred_check_branch
          %375 = sbr.rel (%p373) target = $region72
        $region71: #{tpu_custom_call.1} parent=51 // pred_region
          %377 = dma.done [#allocation9], 512
        $region72: #{tpu_custom_call.1} parent=51 // pred_fallthru
          _
        %s378 = sand.u32 %s37, 1
        %s379 = scalar_lea.sflag [#allocation3], %s378
        %s380 = sand.u32 %s37, 1
        %s381 = smul.addr %s380, 8
        %s382 = scalar_lea.vmem [#allocation2], %s381
        %p383 = pneg %p50
        %p384 = pneg %p47
        %s385 = sand.u32 %s29, 1
        %s386 = scalar_lea.sflag [#allocation6], %s385
        %s387 = sand.u32 %s63, 1
        %s388 = smul.addr %s387, 8
        %s389 = scalar_lea.vmem [#allocation5], %s388
        %p390 = pneg %p76
        %p391 = pneg %p73
        %p392 = pneg %p97
        %p393 = pneg %p94
        %p394 = pneg %p118
        %p395 = pneg %p115
        %p396 = pneg %p139
        %p397 = pneg %p136
        %p398 = pneg %p160
        %p399 = pneg %p157
        %p400 = pneg %p181
        %p401 = pneg %p178
        %p402 = pneg %p202
        %p403 = pneg %p199
        %p404 = pneg %p228
        %p405 = pneg %p225
        %s406 = sand.u32 %s215, 1
        %s407 = scalar_lea.sflag [#allocation4], %s406
        %s408 = sand.u32 %s215, 1
        %s409 = smul.addr %s408, 8
        %s410 = scalar_lea.vmem [#allocation11], %s409
        %v411 = vld [vmem:[%s347] sm:$0xff]
        %v412 = vld [vmem:[%s357] sm:$0xff]
        %v413 = vld [vmem:[#allocation7] sm:$0xff]
        %v414 = vld [vmem:[#allocation7 + $0x8] sm:$0xff]
        %v415 = vld [vmem:[#allocation7 + $0x10] sm:$0xff]
        %v416 = vld [vmem:[#allocation7 + $0x18] sm:$0xff]
        %v417 = vld [vmem:[%s3] sm:$0x1]
        %v419 = vperm.slane %v417, 0
        %vm421 = vcmask 261120
        %v423 = vsel %vm421, %v411, 0
        %425 = vmatpush.msra.mxu0 0.0
        %426 = vmatpush.msra.mxu0 0.0
        %427 = vmatpush.msra.mxu0 0.0
        %428 = vmatpush.msra.mxu0 0.0
        %429 = vmatpush.msra.mxu0 0.0
        %430 = vmatpush.msra.mxu0 0.0
        %431 = vmatpush.msra.mxu0 0.0
        %432 = vmatpush.msra.mxu0 0.0
        %433 = vmatpush.msra.mxu0 0.0
        %434 = vmatpush.msra.mxu0 0.0
        %435 = vmatpush.msra.mxu0 0.0
        %436 = vmatpush.msra.mxu0 0.0
        %437 = vmatpush.msra.mxu0 %v416
        %438 = vmatpush.msra.mxu0 %v415
        %439 = vmatpush.msra.mxu0 %v414
        %440 = vmatpush.msra.mxu0 %v413
        %441 = vmatmul.f32.gmra.mxu0 %v423
        %v442 = vpop.f32.mrf.mxu0
        %v443 = vadd.f32 %v419, %v442
        %444 = vdwg.mxu0
        %v445 = vld [vmem:[#allocation8] sm:$0xff]
        %v446 = vld [vmem:[#allocation8 + $0x8] sm:$0xff]
        %v447 = vld [vmem:[#allocation8 + $0x10] sm:$0xff]
        %v448 = vld [vmem:[#allocation8 + $0x18] sm:$0xff]
        %v449 = vld [vmem:[%s5] sm:$0x1]
        %v451 = vperm.slane %v449, 0
        %v454 = vsel %vm421, %v412, 0
        %456 = vmatpush.msra.mxu0 0.0
        %457 = vmatpush.msra.mxu0 0.0
        %458 = vmatpush.msra.mxu0 0.0
        %459 = vmatpush.msra.mxu0 0.0
        %460 = vmatpush.msra.mxu0 0.0
        %461 = vmatpush.msra.mxu0 0.0
        %462 = vmatpush.msra.mxu0 0.0
        %463 = vmatpush.msra.mxu0 0.0
        %464 = vmatpush.msra.mxu0 0.0
        %465 = vmatpush.msra.mxu0 0.0
        %466 = vmatpush.msra.mxu0 0.0
        %467 = vmatpush.msra.mxu0 0.0
        %468 = vmatpush.msra.mxu0 %v448
        %469 = vmatpush.msra.mxu0 %v447
        %470 = vmatpush.msra.mxu0 %v446
        %471 = vmatpush.msra.mxu0 %v445
        %472 = vmatmul.f32.gmra.mxu0 %v454
        %v473 = vpop.f32.mrf.mxu0
        %v474 = vadd.f32 %v451, %v473
        %475 = vdwg.mxu0
        %v477 = vsel %vm421, %v443, 0
        %v480 = vsel %vm421, %v474, 0
        %482 = vmatpush.xpose.msra.mxu0 0.0
        %483 = vmatpush.xpose.msra.mxu0 0.0
        %484 = vmatpush.xpose.msra.mxu0 0.0
        %485 = vmatpush.xpose.msra.mxu0 0.0
        %486 = vmatpush.xpose.msra.mxu0 0.0
        %487 = vmatpush.xpose.msra.mxu0 0.0
        %488 = vmatpush.xpose.msra.mxu0 0.0
        %489 = vmatpush.xpose.msra.mxu0 0.0
        %490 = vmatpush.xpose.msra.mxu0 0.0
        %491 = vmatpush.xpose.msra.mxu0 0.0
        %492 = vmatpush.xpose.msra.mxu0 0.0
        %493 = vmatpush.xpose.msra.mxu0 0.0
        %494 = vmatpush.xpose.msra.mxu0 0.0
        %495 = vmatpush.xpose.msra.mxu0 0.0
        %496 = vmatpush.xpose.msra.mxu0 0.0
        %497 = vmatpush.xpose.msra.mxu0 %v480
        %498 = vmatmul.f32.gmra.mxu0 %v477
        %v499 = vpop.f32.mrf.mxu0
        %v500 = vadd.f32 0.0, %v499
        %501 = vdwg.mxu0
        %vm502 = vcmask 64512
        %v503 = vsel %vm502, %v500, -inf
        %504 = vmax.xlane.f32.xlu0 %v503
        %v505 = vpop.xlane.xlu0 %504
        %v506 = vsub.f32 %v500, %v505
        %v507 = vmul.f32 %v506, 1.442695
        %v508 = vpow.pop %v507
        %v509 = vsel %vm502, %v508, 0.0
        %510 = vadd.xlane.f32.xlu0 %v509
        %v511 = vpop.xlane.xlu0 %510
        %v512 = vrcp.pop %v511
        %v513 = vmul.f32 %v508, %v512
        %514 = vrot.lane.b32.xlu0 %v474, 96
        %v515 = vpop.permute.xlu0 %514
        %v518 = vsel %vm502, %v513, 0
        %520 = vmatpush.msra.mxu0 0.0
        %521 = vmatpush.msra.mxu0 0.0
        %522 = vmatpush.msra.mxu0 0.0
        %523 = vmatpush.msra.mxu0 0.0
        %524 = vmatpush.msra.mxu0 0.0
        %525 = vmatpush.msra.mxu0 0.0
        %526 = vmatpush.msra.mxu0 0.0
        %527 = vmatpush.msra.mxu0 0.0
        %528 = vmatpush.msra.mxu0 0.0
        %529 = vmatpush.msra.mxu0 0.0
        %530 = vmatpush.msra.mxu0 0.0
        %531 = vmatpush.msra.mxu0 0.0
        %532 = vmatpush.msra.mxu0 0.0
        %533 = vmatpush.msra.mxu0 0.0
        %534 = vmatpush.msra.mxu0 0.0
        %535 = vmatpush.msra.mxu0 %v515
        %536 = vmatmul.f32.gmra.mxu0 %v518
        %v537 = vpop.f32.mrf.mxu0
        %v538 = vadd.f32 0.0, %v537
        %539 = vdwg.mxu0
        %v540 = vld [vmem:[#allocation10] sm:$0xff]
        %v541 = vld [vmem:[#allocation10 + $0x8] sm:$0xff]
        %v542 = vld [vmem:[#allocation10 + $0x10] sm:$0xff]
        %v543 = vld [vmem:[#allocation10 + $0x18] sm:$0xff]
        %v544 = vld [vmem:[%s7] sm:$0x1]
        %v546 = vperm.slane %v544, 0
        %v549 = vsel %vm421, %v538, 0
        %551 = vmatpush.msra.mxu0 0.0
        %552 = vmatpush.msra.mxu0 0.0
        %553 = vmatpush.msra.mxu0 0.0
        %554 = vmatpush.msra.mxu0 0.0
        %555 = vmatpush.msra.mxu0 0.0
        %556 = vmatpush.msra.mxu0 0.0
        %557 = vmatpush.msra.mxu0 0.0
        %558 = vmatpush.msra.mxu0 0.0
        %559 = vmatpush.msra.mxu0 0.0
        %560 = vmatpush.msra.mxu0 0.0
        %561 = vmatpush.msra.mxu0 0.0
        %562 = vmatpush.msra.mxu0 0.0
        %563 = vmatpush.msra.mxu0 %v543
        %564 = vmatpush.msra.mxu0 %v542
        %565 = vmatpush.msra.mxu0 %v541
        %566 = vmatpush.msra.mxu0 %v540
        %567 = vmatmul.f32.gmra.mxu0 %v549
        %v568 = vpop.f32.mrf.mxu0
        %v569 = vadd.f32 %v546, %v568
        %570 = vdwg.mxu0
        %571 = vst.msk [vmem:[%s410] sm:$0xff] %vm421, %v569
        %s572 = sand.u32 %s215, 1
        %s573 = scalar_lea.sflag [#allocation4], %s572
        %s574 = sand.u32 %s215, 1
        %s575 = smul.addr %s574, 8
        %s576 = scalar_lea.vmem [#allocation11], %s575
        // Predicated region
        $region73: #{tpu_custom_call.1} parent=51 // pred_check
          %p577 = pneg %p225
        $region74: #{tpu_custom_call.1} parent=51 // pred_check_branch
          %579 = sbr.rel (%p577) target = $region76
        $region75: #{tpu_custom_call.1} parent=51 // pred_region
          %581 = vsyncadd %s573, 0
          %s582 = smul.addr %s29, 8
          %s583 = scalar_lea.hbm %s8, %s582
          %s585 = sshll.u32 %s576, 4
          %s586 = int_to_ptr.vmem [resolvable:$true] %s585
          %s587 = sshll.u32 %s583, 4
          %s588 = int_to_ptr.hbm [resolvable:$true] %s587
          %590 = dma.vmem_to_hbm [thread:$0]  %s586, 128, %s588, %s573
        $region76: #{tpu_custom_call.1} parent=51 // pred_fallthru
          _
      $region52: #{tpu_custom_call.1} parent=5 // pred_fallthru
        _
      %p591 = scmp.le.s32.totalorder 2, %s24
      // Predicated region
      $region77: #{tpu_custom_call.1} parent=5 // pred_check
        %p592 = pneg %p591
      $region78: #{tpu_custom_call.1} parent=5 // pred_check_branch
        %594 = sbr.rel (%p592) target = $region80
      $region79: #{tpu_custom_call.1} parent=5 // pred_region
        %s595 = ssub.s32 %s24, 2
        // Predicated region
        $region81: #{tpu_custom_call.1} parent=79 // pred_check
          %p596 = pneg %p231
        $region82: #{tpu_custom_call.1} parent=79 // pred_check_branch
          %598 = sbr.rel (%p596) target = $region84
        $region83: #{tpu_custom_call.1} parent=79 // pred_region
          %s599 = sand.u32 %s216, 1
          %s600 = scalar_lea.sflag [#allocation4], %s599
          %s601 = sand.u32 %s216, 1
          %s602 = smul.addr %s601, 8
          %s603 = scalar_lea.vmem [#allocation11], %s602
          %605 = dma.done %s600, 128
        $region84: #{tpu_custom_call.1} parent=79 // pred_fallthru
          _
      $region80: #{tpu_custom_call.1} parent=5 // pred_fallthru
        _
    $region6: #{tpu_custom_call.1} parent=1 // loop_footer
      %s28 = sadd.s32 1, %s24
    $region7: #{tpu_custom_call.1} parent=1 // loop_footer_branch
      %23 = sbr.rel target = $region3
    $region8: #{tpu_custom_call.1} parent=1 // loop_exit
      _
    %606 = vsyncpa [#allocation3], 1
    %s607 = scalar_lea.sflag [#allocation3], 1
    %608 = vsyncpa %s607, 1
    %609 = vsyncpa [#allocation6], 1
    %s610 = scalar_lea.sflag [#allocation6], 1
    %611 = vsyncpa %s610, 1
    %612 = vsyncpa [#allocation9], 1
    %613 = vsyncpa [#allocation4], 1
    %s614 = scalar_lea.sflag [#allocation4], 1
    %615 = vsyncpa %s614, 1

</llo_original>
